<compile_context>
chip_gen: v5e
topology: v5e:2x2
jax: 0.10.0
libtpu: 0.0.40
codegen_flags: <defaults>
</compile_context>

<pallas_src>
import jax
import jax.numpy as jnp
from jax.experimental import pallas as pl
from jax.experimental.pallas import tpu as pltpu

LANE = 128


def _round_up(x, m):
    return ((x + m - 1) // m) * m


def _pick_row_tile(n_pad, max_tile=512):
    """Largest row tile <= max_tile dividing n_pad, preferring >=2 grid steps."""
    cands = [t for t in (512, 256, 128, 64, 32, 16, 8)
             if t <= max_tile and n_pad % t == 0]
    for t in cands:
        if n_pad // t >= 2:
            return t
    return cands[0] if cands else n_pad


def _vmem_limit(tiled_bytes, resident_bytes):
    """Scoped-VMEM limit from actual usage: double-buffered tiles + residents, ~2x headroom."""
    need = 2 * tiled_bytes + resident_bytes
    return int(min(max(2 * need, 4 << 20), 96 << 20))


# ---------------- kernels ----------------

def project_kernel(x_ref, w_ref, p_ref):
    # P = X @ W_neigh  (bf16 operands, f32 accumulate, bf16 out for the A @ P matmul)
    p_ref[...] = jnp.dot(x_ref[...], w_ref[...],
                         preferred_element_type=jnp.float32).astype(p_ref.dtype)


def sage_layer1_kernel(a_ref, invdeg_ref, x_ref, p1_ref,
                       w1s_ref, b1_ref, w2n_ref,
                       h1_ref, p2_ref):
    # h1 = relu(x @ W1_self + inv_deg * (A @ (X @ W1_neigh)) + b1)
    neigh = jnp.dot(a_ref[...], p1_ref[...],
                    preferred_element_type=jnp.float32) * invdeg_ref[...]
    self_t = jnp.dot(x_ref[...], w1s_ref[...], preferred_element_type=jnp.float32)
    h1 = jnp.maximum(self_t + neigh + b1_ref[...], 0.0)
    h1_bf = h1.astype(h1_ref.dtype)
    h1_ref[...] = h1_bf
    # Pre-project this row tile for layer 2's neighbor term: P2 = h1 @ W2_neigh
    p2_ref[...] = jnp.dot(h1_bf, w2n_ref[...],
                          preferred_element_type=jnp.float32).astype(p2_ref.dtype)


def sage_layer2_cls_kernel(a_ref, invdeg_ref, h1_ref, p2_ref,
                           w2s_ref, b2_ref, wc_ref, bc_ref, out_ref):
    # h2 = relu(h1 @ W2_self + inv_deg * (A @ (h1 @ W2_neigh)) + b2); out = h2 @ Wc + bc
    neigh = jnp.dot(a_ref[...], p2_ref[...],
                    preferred_element_type=jnp.float32) * invdeg_ref[...]
    self_t = jnp.dot(h1_ref[...], w2s_ref[...], preferred_element_type=jnp.float32)
    h2 = jnp.maximum(self_t + neigh + b2_ref[...], 0.0)
    out_ref[...] = (jnp.dot(h2.astype(wc_ref.dtype), wc_ref[...],
                            preferred_element_type=jnp.float32) + bc_ref[...])


# ---------------- wrapper ----------------

def wordsage_forward(x, edge_index, params, *, max_row_tile=512):
    """x: (N, Din) f32, edge_index: (2, E) int32 -> (N, num_classes) f32."""
    n, din = x.shape
    hid = params["b1"].shape[-1]
    out_c = params["b2"].shape[-1]
    num_classes = params["bc"].shape[-1]

    hid_p = _round_up(hid, LANE)
    out_p = _round_up(out_c, LANE)
    cls_p = _round_up(num_classes, LANE)
    n_pad = _round_up(n, 8)
    tile_n = _pick_row_tile(n_pad, max_row_tile)
    grid = (n_pad // tile_n,)

    # --- glue: dense symmetric 0/1 adjacency (nx.Graph semantics) + inverse degree
    src, dst = edge_index[0], edge_index[1]
    a_f32 = jnp.zeros((n_pad, n_pad), jnp.float32).at[dst, src].set(1.0)
    a_f32 = jnp.maximum(a_f32, a_f32.T)
    deg = jnp.sum(a_f32, axis=1, keepdims=True)
    inv_deg = 1.0 / jnp.maximum(deg, 1.0)              # f32, applied after the dot
    a = a_f32.astype(jnp.bfloat16)                      # 0/1 -> exact in bf16

    x_p = jnp.zeros((n_pad, din), jnp.bfloat16).at[:n].set(x.astype(jnp.bfloat16))

    def pad2(w, r, c):
        return jnp.zeros((r, c), jnp.float32).at[:w.shape[0], :w.shape[1]].set(w)

    # lane-dense (128-multiple) weights/biases; zero padding keeps results exact
    w1s = pad2(params["w1s"], din, hid_p).astype(jnp.bfloat16)
    w1n = pad2(params["w1n"], din, hid_p).astype(jnp.bfloat16)
    b1 = pad2(params["b1"], 1, hid_p)
    w2s = pad2(params["w2s"], hid_p, out_p).astype(jnp.bfloat16)
    w2n = pad2(params["w2n"], hid_p, out_p).astype(jnp.bfloat16)
    b2 = pad2(params["b2"], 1, out_p)
    wc = pad2(params["wc"], out_p, cls_p).astype(jnp.bfloat16)
    bc = pad2(params["bc"], 1, cls_p)

    row = lambda cols: pl.BlockSpec((tile_n, cols), lambda i: (i, 0))
    full = lambda r, c: pl.BlockSpec((r, c), lambda i: (0, 0))
    parallel = ("parallel",)
    B2, F4 = 2, 4  # bf16 / f32 bytes

    # ---- call 1: P1 = X @ W1_neigh  (row-tiled, parallel)
    tiled1 = tile_n * din * B2 + tile_n * hid_p * B2
    res1 = din * hid_p * B2
    p1 = pl.pallas_call(
        project_kernel,
        grid=grid,
        in_specs=[row(din), full(din, hid_p)],
        out_specs=row(hid_p),
        out_shape=jax.ShapeDtypeStruct((n_pad, hid_p), jnp.bfloat16),
        compiler_params=pltpu.CompilerParams(
            dimension_semantics=parallel,
            vmem_limit_bytes=_vmem_limit(tiled1, res1)),
    )(x_p, w1n)

    # ---- call 2: h1 = relu(X@W1s + inv_deg*(A@P1) + b1);  P2 = h1 @ W2n
    tiled2 = (tile_n * n_pad * B2 + tile_n * F4 + tile_n * din * B2
              + tile_n * hid_p * B2 + tile_n * out_p * B2)
    res2 = (n_pad * hid_p * B2 + din * hid_p * B2 + hid_p * F4 + hid_p * out_p * B2)
    flops2 = int(2 * n_pad * n_pad * hid_p + 2 * n_pad * din * hid_p
                 + 2 * n_pad * hid_p * out_p)
    bytes2 = int(n_pad * n_pad * B2 + n_pad * (din + 2 * hid_p + out_p) * B2
                 + n_pad * F4 + res2)
    h1, p2 = pl.pallas_call(
        sage_layer1_kernel,
        grid=grid,
        in_specs=[row(n_pad), row(1), row(din),
                  full(n_pad, hid_p), full(din, hid_p), full(1, hid_p),
                  full(hid_p, out_p)],
        out_specs=(row(hid_p), row(out_p)),
        out_shape=(jax.ShapeDtypeStruct((n_pad, hid_p), jnp.bfloat16),
                   jax.ShapeDtypeStruct((n_pad, out_p), jnp.bfloat16)),
        cost_estimate=pl.CostEstimate(flops=flops2, transcendentals=0,
                                      bytes_accessed=bytes2),
        compiler_params=pltpu.CompilerParams(
            dimension_semantics=parallel,
            vmem_limit_bytes=_vmem_limit(tiled2, res2)),
    )(a, inv_deg, x_p, p1, w1s, b1, w2n)

    # ---- call 3: h2 = relu(h1@W2s + inv_deg*(A@P2) + b2);  out = h2 @ Wc + bc
    tiled3 = (tile_n * n_pad * B2 + tile_n * F4 + tile_n * hid_p * B2
              + tile_n * cls_p * F4)
    res3 = (n_pad * out_p * B2 + hid_p * out_p * B2 + out_p * F4
            + out_p * cls_p * B2 + cls_p * F4)
    flops3 = int(2 * n_pad * n_pad * out_p + 2 * n_pad * hid_p * out_p
                 + 2 * n_pad * out_p * cls_p)
    bytes3 = int(n_pad * n_pad * B2 + n_pad * hid_p * B2 + n_pad * F4
                 + n_pad * cls_p * F4 + res3)
    out_padded = pl.pallas_call(
        sage_layer2_cls_kernel,
        grid=grid,
        in_specs=[row(n_pad), row(1), row(hid_p),
                  full(n_pad, out_p), full(hid_p, out_p), full(1, out_p),
                  full(out_p, cls_p), full(1, cls_p)],
        out_specs=row(cls_p),
        out_shape=jax.ShapeDtypeStruct((n_pad, cls_p), jnp.float32),
        cost_estimate=pl.CostEstimate(flops=flops3, transcendentals=0,
                                      bytes_accessed=bytes3),
        compiler_params=pltpu.CompilerParams(
            dimension_semantics=parallel,
            vmem_limit_bytes=_vmem_limit(tiled3, res3)),
    )(a, inv_deg, h1, p2, w2s, b2, wc, bc)

    return out_padded[:n, :num_classes]


def init_params(key, in_channels, hidden_channels, out_channels, num_classes):
    ks = jax.random.split(key, 8)
    s = lambda fan_in: 1.0 / jnp.sqrt(jnp.float32(fan_in))
    return {
        # SAGEConv1: in -> hidden (self weight, neighbor weight, bias)
        "w1s": jax.random.uniform(ks[0], (in_channels, hidden_channels),
                                  jnp.float32, -s(in_channels), s(in_channels)),
        "w1n": jax.random.uniform(ks[1], (in_channels, hidden_channels),
                                  jnp.float32, -s(in_channels), s(in_channels)),
        "b1": jax.random.uniform(ks[2], (1, hidden_channels),
                                 jnp.float32, -s(in_channels), s(in_channels)),
        # SAGEConv2: hidden -> out
        "w2s": jax.random.uniform(ks[3], (hidden_channels, out_channels),
                                  jnp.float32, -s(hidden_channels), s(hidden_channels)),
        "w2n": jax.random.uniform(ks[4], (hidden_channels, out_channels),
                                  jnp.float32, -s(hidden_channels), s(hidden_channels)),
        "b2": jax.random.uniform(ks[5], (1, out_channels),
                                 jnp.float32, -s(hidden_channels), s(hidden_channels)),
        # classifier: out -> num_classes
        "wc": jax.random.uniform(ks[6], (out_channels, num_classes),
                                 jnp.float32, -s(out_channels), s(out_channels)),
        "bc": jax.random.uniform(ks[7], (1, num_classes),
                                 jnp.float32, -s(out_channels), s(out_channels)),
    }


if __name__ == "__main__":
    N, E = 64, 128                     # nodes, edges
    IN_C, HID_C, OUT_C, NUM_CLASSES = 32, 32, 32, 8

    key = jax.random.PRNGKey(0)
    k_x, k_e, k_p = jax.random.split(key, 3)

    x = jax.random.normal(k_x, (N, IN_C), jnp.float32)
    edge_index = jax.random.randint(k_e, (2, E), 0, N, jnp.int32)
    params = init_params(k_p, IN_C, HID_C, OUT_C, NUM_CLASSES)

    out = wordsage_forward(x, edge_index, params)
    jax.block_until_ready(out)
    assert out.shape == (N, NUM_CLASSES)
    print("KERNEL_OK")
</pallas_src>

<mosaic_0001>
module attributes {stable_mosaic.version = 11 : i64} {
  func.func @project_kernel(%arg0: i32, %arg1: memref<32x32xbf16, #tpu.memory_space<vmem>>, %arg2: memref<32x128xbf16, #tpu.memory_space<vmem>>, %arg3: memref<32x128xbf16, #tpu.memory_space<vmem>>) attributes {dimension_semantics = [#tpu.dimension_semantics<parallel>], iteration_bounds = array<i64: 2>, scalar_prefetch = 0 : i64, scratch_operands = 0 : i64, tpu.core_type = #tpu.core_type<tc>, window_params = [{transform_indices = @transform_0, window_bounds = array<i64: 32, 32>}, {pipeline_mode = #tpu.pipeline_mode<synchronous>, transform_indices = @transform_1, window_bounds = array<i64: 32, 128>}, {transform_indices = @transform_2, window_bounds = array<i64: 32, 128>}]} {
    %c0 = arith.constant 0 : index
    %c0_0 = arith.constant 0 : index
    %0 = vector.load %arg1[%c0, %c0_0] : memref<32x32xbf16, #tpu.memory_space<vmem>>, vector<32x32xbf16>
    %c0_1 = arith.constant 0 : index
    %c0_2 = arith.constant 0 : index
    %1 = vector.load %arg2[%c0_1, %c0_2] : memref<32x128xbf16, #tpu.memory_space<vmem>>, vector<32x128xbf16>
    %cst = arith.constant dense<0.000000e+00> : vector<32x128xf32>
    %2 = tpu.matmul %0, %1, %cst {dimension_numbers = #tpu.dot_dimension_numbers<[1], [0], [0], [1], [0, 0, 1, 1], [], []>} : vector<32x32xbf16>, vector<32x128xbf16>, vector<32x128xf32> -> vector<32x128xf32>
    %3 = arith.truncf %2 : vector<32x128xf32> to vector<32x128xbf16>
    %c0_3 = arith.constant 0 : index
    %c0_4 = arith.constant 0 : index
    %4 = vector.load %arg3[%c0_3, %c0_4] : memref<32x128xbf16, #tpu.memory_space<vmem>>, vector<32x128xbf16>
    tpu.vector_store %arg3[%c0_3, %c0_4], %3 {strides = array<i32>} : memref<32x128xbf16, #tpu.memory_space<vmem>>, vector<32x128xbf16>,
    return
  }
  func.func @transform_0(%arg0: i32) -> (i32, i32) {
    %c0_i32 = arith.constant 0 : i32
    %c0_i32_0 = arith.constant 0 : i32
    return %arg0, %c0_i32 : i32, i32
  }
  func.func @transform_1(%arg0: i32) -> (i32, i32) {
    %c0_i32 = arith.constant 0 : i32
    %c0_i32_0 = arith.constant 0 : i32
    %c0_i32_1 = arith.constant 0 : i32
    return %c0_i32, %c0_i32_0 : i32, i32
  }
  func.func @transform_2(%arg0: i32) -> (i32, i32) {
    %c0_i32 = arith.constant 0 : i32
    %c0_i32_0 = arith.constant 0 : i32
    return %arg0, %c0_i32 : i32, i32
  }
}

</mosaic_0001>

<llo_original>
// kernel: tpu_custom_call.1
$region0: #{tpu_custom_call.1}
  #allocation0 [shape = 'u32[]', space=smem, size = 0x4, offset = 0x4, fixed_abs, tag = 'smem constant byte address 0x4 - core index']
  #allocation1 [shape = 'u32[72,128]{1,0:T(1,128)}', space=vmem, size = 0x9000, scoped, tag = 'internal scratch']
  %s0 = inlined_call_operand.vmem [shape: bf16[64,32], index: 0, kind: input, shape index: {}]
  %s1 = inlined_call_operand.vmem [shape: bf16[32,128], index: 1, kind: input, shape index: {}]
  %s2 = inlined_call_operand.hbm [shape: bf16[64,128], index: 2, kind: output, shape index: {}]
  %s3 = sld [smem:[#allocation0]]
  $region41: #{tpu_custom_call.1} parent=0
    _
  %s5 = ssub.s32 1, %s3
  %s6 = scalar_select 0, %s5, %s3
  $region1: #{tpu_custom_call.1} parent=0
    #allocation2 [shape = 'u8[16384]{0}', space=vmem, size = 0x4000, scoped, tag = 'output window, operand 0']
    #allocation3 [shape = 's32[2]{0}', space=sflag, size = 0x8, scoped, tag = 'scoped memory for tpu_custom_call.1']
    %7 = vsyncpa [#allocation3], 0
    %s8 = scalar_lea.sflag [#allocation3], 1
    %9 = vsyncpa %s8, 0
    loop: start=0, step=1, limit=4
    $region2: #{tpu_custom_call.1} parent=1 // loop_pre_header
      _
    $region3: #{tpu_custom_call.1} parent=1 // loop_header
      %s11 = sphi 0, %s15
      %p12 = scmp.ge.s32.totalorder %s11, 4
      %s21 = sphi 0, %s23
      %s24 = sphi 0, %s21
      %s25 = sphi 0, %s24
      %s41 = sphi 0, %s25
      %s45 = sphi 0, %s45
      %s47 = sphi 0, %s45
      %s48 = sphi 0, %s47
      %s62 = sphi 0, %s48
      %s68 = sphi 0, %s70
      %s71 = sphi 0, %s68
      %s72 = sphi 0, %s71
      %s88 = sphi 0, %s72
    $region4: #{tpu_custom_call.1} parent=1 // loop_header_branch
      %14 = sbr.rel (%p12) target = $region8
    $region5: #{tpu_custom_call.1} parent=1 // loop_body
      %s16 = ssub.s32 %s11, 1
      %s17 = ssub.s32 %s11, 2
      %s18 = sadd.s32 %s11, 1
      %s19 = ssub.s32 %s11, %s18
      %p20 = scmp.eq.s32.totalorder %s19, 0
      %s22 = sadd.s32 %s21, 1
      %s23 = scalar_select %p20, %s21, %s22
      %p26 = pneg %p20
      %p27 = scmp.eq.s32.totalorder %s11, 1
      %p28 = por %p26, %p27
      %p29 = scmp.ne.s32.totalorder %s21, %s24
      %p30 = scmp.eq.s32.totalorder %s11, 0
      %p31 = por %p29, %p30
      %p32 = scmp.ne.s32.totalorder %s21, %s24
      %p33 = scmp.eq.s32.totalorder %s16, 1
      %p34 = por %p32, %p33
      %p35 = scmp.ne.s32.totalorder %s24, %s25
      %p36 = scmp.eq.s32.totalorder %s16, 0
      %p37 = por %p35, %p36
      %p38 = scmp.ne.s32.totalorder %s24, %s25
      %p39 = scmp.eq.s32.totalorder %s17, 1
      %p40 = por %p38, %p39
      %p42 = scmp.ne.s32.totalorder %s25, %s41
      %p43 = scmp.eq.s32.totalorder %s17, 0
      %p44 = por %p42, %p43
      %s46 = sadd.s32 %s45, 1
      %p49 = scmp.eq.s32.totalorder %s11, 1
      %p50 = scmp.ne.s32.totalorder %s45, %s47
      %p51 = scmp.eq.s32.totalorder %s11, 0
      %p52 = por %p50, %p51
      %p53 = scmp.ne.s32.totalorder %s45, %s47
      %p54 = scmp.eq.s32.totalorder %s16, 1
      %p55 = por %p53, %p54
      %p56 = scmp.ne.s32.totalorder %s47, %s48
      %p57 = scmp.eq.s32.totalorder %s16, 0
      %p58 = por %p56, %p57
      %p59 = scmp.ne.s32.totalorder %s47, %s48
      %p60 = scmp.eq.s32.totalorder %s17, 1
      %p61 = por %p59, %p60
      %p63 = scmp.ne.s32.totalorder %s48, %s62
      %p64 = scmp.eq.s32.totalorder %s17, 0
      %p65 = por %p63, %p64
      %s66 = ssub.s32 %s11, %s18
      %p67 = scmp.eq.s32.totalorder %s66, 0
      %s69 = sadd.s32 %s68, 1
      %s70 = scalar_select %p67, %s68, %s69
      %p73 = pneg %p67
      %p74 = scmp.eq.s32.totalorder %s11, 1
      %p75 = por %p73, %p74
      %p76 = scmp.ne.s32.totalorder %s68, %s71
      %p77 = scmp.eq.s32.totalorder %s11, 0
      %p78 = por %p76, %p77
      %p79 = scmp.ne.s32.totalorder %s68, %s71
      %p80 = scmp.eq.s32.totalorder %s16, 1
      %p81 = por %p79, %p80
      %p82 = scmp.ne.s32.totalorder %s71, %s72
      %p83 = scmp.eq.s32.totalorder %s16, 0
      %p84 = por %p82, %p83
      %p85 = scmp.ne.s32.totalorder %s71, %s72
      %p86 = scmp.eq.s32.totalorder %s17, 1
      %p87 = por %p85, %p86
      %p89 = scmp.ne.s32.totalorder %s72, %s88
      %p90 = scmp.eq.s32.totalorder %s17, 0
      %p91 = por %p89, %p90
      %p92 = scmp.le.s32.totalorder 1, %s11
      %p93 = scmp.lt.s32.totalorder %s11, 3
      %p94 = pnand %p92, %p93
      %p95 = pneg %p94
      // Predicated region
      $region9: #{tpu_custom_call.1} parent=5 // pred_check
        _
      $region10: #{tpu_custom_call.1} parent=5 // pred_check_branch
        %97 = sbr.rel (%p94) target = $region12
      $region11: #{tpu_custom_call.1} parent=5 // pred_region
        %s98 = ssub.s32 %s11, 1
        // Predicated region
        $region13: #{tpu_custom_call.1} parent=11 // pred_check
          %p99 = pneg %p58
        $region14: #{tpu_custom_call.1} parent=11 // pred_check_branch
          %101 = sbr.rel (%p99) target = $region16
        $region15: #{tpu_custom_call.1} parent=11 // pred_region
          _
        $region16: #{tpu_custom_call.1} parent=11 // pred_fallthru
          _
      $region12: #{tpu_custom_call.1} parent=5 // pred_fallthru
        _
      %p102 = scmp.lt.s32.totalorder %s11, 2
      // Predicated region
      $region17: #{tpu_custom_call.1} parent=5 // pred_check
        %p103 = pneg %p102
      $region18: #{tpu_custom_call.1} parent=5 // pred_check_branch
        %105 = sbr.rel (%p103) target = $region20
      $region19: #{tpu_custom_call.1} parent=5 // pred_region
        // Predicated region
        $region21: #{tpu_custom_call.1} parent=19 // pred_check
          %p106 = pneg %p31
        $region22: #{tpu_custom_call.1} parent=19 // pred_check_branch
          %108 = sbr.rel (%p106) target = $region24
        $region23: #{tpu_custom_call.1} parent=19 // pred_region
          %s109 = smul.u32 4, %s11
          %p110 = scmp.lt.s32.totalorder %s109, 7
          %s111 = scalar_select %p110, %s109, 7
          %s112 = smul.addr %s111, 4
          %s113 = scalar_lea.vmem %s0, %s112
          %s114 = smul.u32 4, %s11
        $region24: #{tpu_custom_call.1} parent=19 // pred_fallthru
          _
      $region20: #{tpu_custom_call.1} parent=5 // pred_fallthru
        _
      %p115 = scmp.le.s32.totalorder 1, %s11
      %p116 = scmp.lt.s32.totalorder %s11, 3
      %p117 = pnand %p115, %p116
      %p118 = pneg %p117
      // Predicated region
      $region25: #{tpu_custom_call.1} parent=5 // pred_check
        _
      $region26: #{tpu_custom_call.1} parent=5 // pred_check_branch
        %120 = sbr.rel (%p117) target = $region28
      $region27: #{tpu_custom_call.1} parent=5 // pred_region
        %s121 = ssub.s32 %s11, 1
        %s122 = smul.u32 4, %s16
        %p123 = scmp.lt.s32.totalorder %s122, 7
        %s124 = scalar_select %p123, %s122, 7
        %s125 = smul.addr %s124, 4
        %s126 = scalar_lea.vmem %s0, %s125
        %p127 = pneg %p37
        %p128 = pneg %p34
        %p129 = pneg %p58
        %p130 = pneg %p55
        %p131 = pneg %p84
        %p132 = pneg %p81
        %s133 = sand.u32 %s71, 1
        %s134 = scalar_lea.sflag [#allocation3], %s133
        %s135 = sand.u32 %s71, 1
        %s136 = smul.addr %s135, 16
        %s137 = scalar_lea.vmem [#allocation2], %s136
        %s138 = smul.u32 4, %s16
        %p139 = scmp.lt.s32.totalorder %s138, 7
        %s140 = scalar_select %p139, %s138, 7
        %s141 = smul.addr %s140, 4
        %s142 = scalar_lea.vmem %s0, %s141
        %s143 = smul.u32 4, %s16
        %s144 = smul.u32 4, %s16
        %v146 = vld [vmem:[%s142] sm:$0xf]
        %v147 = vld [vmem:[%s142 + $0x4] sm:$0xf]
        %v148 = vld [vmem:[%s142 + $0x8] sm:$0xf]
        %v149 = vld [vmem:[%s142 + $0xc] sm:$0xf]
        %v150 = vld [vmem:[%s1] sm:$0xf]
        %v151 = vld [vmem:[%s1 + $0x4] sm:$0xf]
        %v152 = vld [vmem:[%s1 + $0x8] sm:$0xf]
        %v153 = vld [vmem:[%s1 + $0xc] sm:$0xf]
        %v158 = vunpack.c.l.b16 %v146
        %v159 = vunpack.c.l.b16 %v147
        %v160 = vunpack.c.l.b16 %v148
        %v161 = vunpack.c.l.b16 %v149
        %v162 = vpack.c.b16 %v159, %v158
        %v163 = vpack.c.b16 %v161, %v160
        %v168 = vunpack.c.l.b16 %v150
        %v169 = vunpack.c.l.b16 %v151
        %v170 = vunpack.c.l.b16 %v152
        %v171 = vunpack.c.l.b16 %v153
        %v172 = vpack.c.b16 %v169, %v168
        %v173 = vpack.c.b16 %v171, %v170
        %vm176 = vcmask 261120
        %v178 = vsel %vm176, %v162, 0
        %v181 = vsel %vm176, %v163, 0
        %183 = vmatpush.bf16.msra.mxu0 0
        %184 = vmatpush.bf16.msra.mxu0 0
        %185 = vmatpush.bf16.msra.mxu0 0
        %186 = vmatpush.bf16.msra.mxu0 0
        %187 = vmatpush.bf16.msra.mxu0 0
        %188 = vmatpush.bf16.msra.mxu0 0
        %189 = vmatpush.bf16.msra.mxu0 %v173
        %190 = vmatpush.bf16.msra.mxu0 %v172
        %191 = vmatmul.bf16.gmra.mxu0 %v178
        %v192 = vpop.f32.mrf.mxu0
        %v193 = vadd.f32 0.0, %v192
        %v194 = vpop.f32.mrf.mxu0
        %v195 = vadd.f32 0.0, %v194
        %196 = vmatmul.bf16.gmra.mxu0 %v181
        %v197 = vpop.f32.mrf.mxu0
        %v198 = vadd.f32 0.0, %v197
        %v199 = vpop.f32.mrf.mxu0
        %v200 = vadd.f32 0.0, %v199
        %201 = vdwg.mxu0
        %v202 = vpack.c.bf16 %v193, %v193
        %v203 = vpack.c.bf16 %v195, %v195
        %v204 = vpack.c.bf16 %v198, %v198
        %v205 = vpack.c.bf16 %v200, %v200
        %206 = vst [vmem:[%s137] sm:$0xf] %v202
        %207 = vst [vmem:[%s137 + $0x4] sm:$0xf] %v203
        %208 = vst [vmem:[%s137 + $0x8] sm:$0xf] %v204
        %209 = vst [vmem:[%s137 + $0xc] sm:$0xf] %v205
        %s210 = sand.u32 %s71, 1
        %s211 = scalar_lea.sflag [#allocation3], %s210
        %s212 = sand.u32 %s71, 1
        %s213 = smul.addr %s212, 16
        %s214 = scalar_lea.vmem [#allocation2], %s213
        // Predicated region
        $region29: #{tpu_custom_call.1} parent=27 // pred_check
          %p215 = pneg %p81
        $region30: #{tpu_custom_call.1} parent=27 // pred_check_branch
          %217 = sbr.rel (%p215) target = $region32
        $region31: #{tpu_custom_call.1} parent=27 // pred_region
          %s218 = smul.u32 4, %s16
          %220 = vsyncadd %s211, 0
          %s221 = smul.addr %s218, 4
          %s222 = scalar_lea.hbm %s2, %s221
          %s223 = sshll.u32 %s214, 4
          %s224 = int_to_ptr.vmem [resolvable:$true] %s223
          %s225 = sshll.u32 %s222, 4
          %s226 = int_to_ptr.hbm [resolvable:$true] %s225
          %231 = dma.vmem_to_hbm [thread:$0]  %s224, 256, %s226, %s211, 64, 64, 4
        $region32: #{tpu_custom_call.1} parent=27 // pred_fallthru
          _
      $region28: #{tpu_custom_call.1} parent=5 // pred_fallthru
        _
      %p232 = scmp.le.s32.totalorder 2, %s11
      // Predicated region
      $region33: #{tpu_custom_call.1} parent=5 // pred_check
        %p233 = pneg %p232
      $region34: #{tpu_custom_call.1} parent=5 // pred_check_branch
        %235 = sbr.rel (%p233) target = $region36
      $region35: #{tpu_custom_call.1} parent=5 // pred_region
        %s236 = ssub.s32 %s11, 2
        // Predicated region
        $region37: #{tpu_custom_call.1} parent=35 // pred_check
          %p237 = pneg %p87
        $region38: #{tpu_custom_call.1} parent=35 // pred_check_branch
          %239 = sbr.rel (%p237) target = $region40
        $region39: #{tpu_custom_call.1} parent=35 // pred_region
          %s240 = sand.u32 %s72, 1
          %s241 = scalar_lea.sflag [#allocation3], %s240
          %s242 = sand.u32 %s72, 1
          %s243 = smul.addr %s242, 16
          %s244 = scalar_lea.vmem [#allocation2], %s243
          %246 = dma.done %s241, 256
        $region40: #{tpu_custom_call.1} parent=35 // pred_fallthru
          _
      $region36: #{tpu_custom_call.1} parent=5 // pred_fallthru
        _
    $region6: #{tpu_custom_call.1} parent=1 // loop_footer
      %s15 = sadd.s32 1, %s11
    $region7: #{tpu_custom_call.1} parent=1 // loop_footer_branch
      %10 = sbr.rel target = $region3
    $region8: #{tpu_custom_call.1} parent=1 // loop_exit
      _
    %247 = vsyncpa [#allocation3], 1
    %s248 = scalar_lea.sflag [#allocation3], 1
    %249 = vsyncpa %s248, 1

</llo_original>
